<compile_context>
chip_gen: v7x
topology: tpu7x:2x2x1
jax: 0.10.0
libtpu: 0.0.40
codegen_flags: <defaults>
</compile_context>

<pallas_src>
import jax
import jax.numpy as jnp
from jax.experimental import pallas as pl
from jax.experimental.pallas import tpu as pltpu


# ---------------------------------------------------------------------------
# Kernel
# ---------------------------------------------------------------------------
def _decoder_block_kernel(x_ref, a_ref, b1_ref, bz_ref, bn_ref, bp_ref, b2_ref,
                          o_ref, xb_ref, yb_ref):
    """Fused ConvRelu + ConvTranspose2d(4,2,1) + ReLU for B_blk images.

    x_ref  : (B, H, W*Cin)            NHWC row slabs
    a_ref  : (3*W*Cin, W*Cmid)        K-fused banded 3x3-conv operator (kh=0,1,2)
    b1_ref : (1, W*Cmid)              conv bias tiled along W
    bz_ref : (W*Cmid, 2*(2*W*Cout))   dh=0 deconv taps, [parity 0 | parity 1]
    bn_ref : (W*Cmid, 2*W*Cout)       dh=-1 tap (feeds output parity 0 only)
    bp_ref : (W*Cmid, 2*W*Cout)       dh=+1 tap (feeds output parity 1 only)
    b2_ref : (1, 2*W*Cout)            deconv bias tiled along (W, s)
    o_ref  : (B, 2, H, 2*W*Cout)      o[b,r,i, j*2C+s*C+c] = out[2i+r, 2j+s, c]
    xb_ref : (B, H, 3*W*Cin)  scratch [x[i-1] | x[i] | x[i+1]] per image
    yb_ref : (B, H, 2*W*Cmid) scratch [y[i-1] | y[i+1]]        per image
    """
    bb, h, wc1 = x_ref.shape
    wc2 = bz_ref.shape[0]
    wo = bn_ref.shape[1]
    m = bb * h
    f32 = jnp.float32

    # ---- stage x as three per-image row-shifted column bands ---------------
    xb_ref[:, :, wc1:2 * wc1] = x_ref[...]                        # center x[i]
    xb_ref[:, 1:, :wc1] = x_ref[:, :h - 1, :]                     # up     x[i-1]
    xb_ref[:, :1, :wc1] = jnp.zeros((bb, 1, wc1), f32)            # halo row
    xb_ref[:, :h - 1, 2 * wc1:] = x_ref[:, 1:, :]                 # down   x[i+1]
    xb_ref[:, h - 1:, 2 * wc1:] = jnp.zeros((bb, 1, wc1), f32)    # halo row

    # ---- ConvRelu: ONE K-fused MXU matmul (K = 3*W*Cin), ReLU ---------------
    y = jnp.dot(xb_ref[...].reshape(m, 3 * wc1), a_ref[...],
                preferred_element_type=f32)
    y = jnp.maximum(y + b1_ref[...], 0.0)          # (M, W*Cmid), stays in VMEM
    y3 = y.reshape(bb, h, wc2)

    # ---- stage only the shifted y bands (center band is `y` itself) --------
    yb_ref[:, 1:, :wc2] = y3[:, :h - 1, :]                        # y[i-1]
    yb_ref[:, :1, :wc2] = jnp.zeros((bb, 1, wc2), f32)
    yb_ref[:, :h - 1, wc2:] = y3[:, 1:, :]                        # y[i+1]
    yb_ref[:, h - 1:, wc2:] = jnp.zeros((bb, 1, wc2), f32)
    yb = yb_ref[...].reshape(m, 2 * wc2)
    y_up, y_dn = yb[:, :wc2], yb[:, wc2:]           # vreg-aligned lane slices

    # ---- ConvTranspose2d(4,2,1) + ReLU: 3 dh-grouped polyphase matmuls ------
    z = jnp.dot(y, bz_ref[...], preferred_element_type=f32)      # dh=0, 256 lanes
    o0 = z[:, :wo] + jnp.dot(y_up, bn_ref[...], preferred_element_type=f32)
    o1 = z[:, wo:] + jnp.dot(y_dn, bp_ref[...], preferred_element_type=f32)
    o0 = jnp.maximum(o0 + b2_ref[...], 0.0)
    o1 = jnp.maximum(o1 + b2_ref[...], 0.0)

    o_ref[:, 0:1, :, :] = o0.reshape(bb, 1, h, wo).astype(o_ref.dtype)
    o_ref[:, 1:2, :, :] = o1.reshape(bb, 1, h, wo).astype(o_ref.dtype)


# ---------------------------------------------------------------------------
# One-time (per weight set) banded-operator construction -- hoisted out of the
# per-call forward per the performance review.
# ---------------------------------------------------------------------------
def _conv3x3_band_weights(w_oihw, width):
    """(Cmid, Cin, 3, 3) -> (3*W*Cin, W*Cmid), K-blocks ordered kh = 0, 1, 2.

    A[kh*W*Cin + jp*Cin + ci, j*Cmid + cm] = w[cm, ci, kh, kw], jp = j + kw - 1
    (zero outside the band => width padding handled structurally)."""
    cmid, cin, khs, kws = w_oihw.shape
    p = jnp.arange(width)[:, None, None]
    j = jnp.arange(width)[None, :, None]
    k = jnp.arange(kws)[None, None, :]
    onehot = (p == j + k - 1).astype(w_oihw.dtype)                # (W, W, 3)
    mats = [jnp.einsum("pjk,mck->pcjm", onehot, w_oihw[:, :, kh, :])
                .reshape(width * cin, width * cmid) for kh in range(khs)]
    return jnp.concatenate(mats, axis=0)


def _deconv_band_weights(w_iohw, width):
    """(Cmid, Cout, 4, 4) -> polyphase banded operators grouped by row shift dh.

    Returns (bz, bn, bp):
      bn (W*Cmid, 2*W*Cout)    : dh=-1 tap (kh=3), output row parity 0
      bz (W*Cmid, 2*2*W*Cout)  : dh= 0 taps, [parity 0 (kh=1) | parity 1 (kh=2)]
      bp (W*Cmid, 2*W*Cout)    : dh=+1 tap (kh=0), output row parity 1
    Columns are j*2*Cout + s*Cout + co for output pixel (2i+r, 2j+s, co), with
    kw = s + 1 - 2*(jp - j); zero when kw is outside [0,4) or jp outside image."""
    cmid, cout, _, kws = w_iohw.shape
    p = jnp.arange(width)[:, None, None]
    j = jnp.arange(width)[None, :, None]
    s = jnp.arange(2)[None, None, :]
    kw = s + 1 - 2 * (p - j)                                      # (W, W, 2)
    onehot = (jnp.arange(kws)[None, None, None, :] == kw[..., None])
    onehot = onehot.astype(w_iohw.dtype)                          # (W, W, 2, 4)

    def band(kh):
        mm = jnp.einsum("pjsk,cok->pcjso", onehot, w_iohw[:, :, kh, :])
        return mm.reshape(width * cmid, 2 * width * cout)

    bz = jnp.concatenate([band(1), band(2)], axis=1)              # dh = 0
    return bz, band(3), band(0)                                   # dh = -1, +1


def prepare_decoder_params(params, width):
    """Call once per weight set; pass the result to decoder_block_forward."""
    bz, bn, bp = _deconv_band_weights(params["deconv_w"], width)
    return {
        "a": _conv3x3_band_weights(params["conv_w"], width),
        "bz": bz, "bn": bn, "bp": bp,
        "b1": jnp.tile(params["conv_b"], width)[None, :],
        "b2": jnp.tile(params["deconv_b"], 2 * width)[None, :],
    }


# ---------------------------------------------------------------------------
# Forward wrapper
# ---------------------------------------------------------------------------
def _pick_block_batch(n, h):
    """Images per grid step: target M = B*H >= 128 (fill the MXU M dim), while
    keeping >= 2 grid steps when N allows so v7x megacore splits the grid."""
    b = min(n, max(1, 128 // max(h, 1)))
    while b > 1 and n // b < 2:
        b -= 1
    while n % b:
        b -= 1
    return b


@jax.jit
def decoder_block_forward(x_nchw, prep):
    """ReLU(ConvTranspose2d(4,2,1)(ReLU(Conv2d(3x3,pad=1)(x)))). NCHW in/out."""
    n, cin, h, w = x_nchw.shape
    a, bz, bn, bp = prep["a"], prep["bz"], prep["bn"], prep["bp"]
    b1, b2 = prep["b1"], prep["b2"]
    wc1, wc2, wo = w * cin, a.shape[1], bn.shape[1]
    cout = wo // (2 * w)

    b_blk = _pick_block_batch(n, h)
    steps = n // b_blk

    # NCHW -> (N, H, W*Cin) row slabs (the only wrapper-side input transpose).
    x_rows = jnp.transpose(x_nchw, (0, 2, 3, 1)).reshape(n, h, wc1)

    ko = pl.pallas_call(
        _decoder_block_kernel,
        out_shape=jax.ShapeDtypeStruct((n, 2, h, wo), x_rows.dtype),
        grid_spec=pltpu.PrefetchScalarGridSpec(
            num_scalar_prefetch=0,
            grid=(steps,),
            in_specs=[
                pl.BlockSpec((b_blk, h, wc1), lambda i: (i, 0, 0)),
                pl.BlockSpec((3 * wc1, wc2), lambda i: (0, 0)),
                pl.BlockSpec((1, wc2), lambda i: (0, 0)),
                pl.BlockSpec((wc2, 2 * wo), lambda i: (0, 0)),
                pl.BlockSpec((wc2, wo), lambda i: (0, 0)),
                pl.BlockSpec((wc2, wo), lambda i: (0, 0)),
                pl.BlockSpec((1, wo), lambda i: (0, 0)),
            ],
            out_specs=pl.BlockSpec((b_blk, 2, h, wo), lambda i: (i, 0, 0, 0)),
            scratch_shapes=[
                pltpu.VMEM((b_blk, h, 3 * wc1), jnp.float32),   # banded x LHS
                pltpu.VMEM((b_blk, h, 2 * wc2), jnp.float32),   # shifted y bands
            ],
        ),
        compiler_params=pltpu.CompilerParams(
            dimension_semantics=("parallel",)),
    )(x_rows, a, b1, bz, bn, bp, b2)

    # (N, r, i, j*2C + s*C + c)  ->  NCHW (N, Cout, 2H, 2W)
    out = ko.reshape(n, 2, h, w, 2, cout)
    out = jnp.transpose(out, (0, 5, 2, 1, 3, 4)).reshape(n, cout, 2 * h, 2 * w)
    return out


# ---------------------------------------------------------------------------
# Pure-JAX reference (lax convs) for a correctness check.
# ---------------------------------------------------------------------------
def _reference(x, params):
    hi = jax.lax.Precision.HIGHEST
    y = jax.lax.conv_general_dilated(
        x, params["conv_w"], (1, 1), ((1, 1), (1, 1)),
        dimension_numbers=("NCHW", "OIHW", "NCHW"), precision=hi)
    y = jax.nn.relu(y + params["conv_b"][None, :, None, None])
    w_flip = jnp.transpose(params["deconv_w"][:, :, ::-1, ::-1], (1, 0, 2, 3))
    o = jax.lax.conv_general_dilated(
        y, w_flip, (1, 1), ((2, 2), (2, 2)), lhs_dilation=(2, 2),
        dimension_numbers=("NCHW", "OIHW", "NCHW"), precision=hi)
    return jax.nn.relu(o + params["deconv_b"][None, :, None, None])


if __name__ == "__main__":
    # DecoderBlock(in_channels=4, middle_channels=8, out_channels=4)
    N, Cin, Cmid, Cout, H, W = 2, 4, 8, 4, 16, 16

    key = jax.random.PRNGKey(0)
    k_x, k_w1, k_b1, k_w2, k_b2 = jax.random.split(key, 5)

    x = jax.random.normal(k_x, (N, Cin, H, W), jnp.float32)
    params = {
        "conv_w": 0.1 * jax.random.normal(k_w1, (Cmid, Cin, 3, 3), jnp.float32),
        "conv_b": 0.1 * jax.random.normal(k_b1, (Cmid,), jnp.float32),
        "deconv_w": 0.1 * jax.random.normal(k_w2, (Cmid, Cout, 4, 4), jnp.float32),
        "deconv_b": 0.1 * jax.random.normal(k_b2, (Cout,), jnp.float32),
    }

    prep = prepare_decoder_params(params, W)   # hoisted: once per weight set

    out = jax.block_until_ready(decoder_block_forward(x, prep))
    assert out.shape == (N, Cout, 2 * H, 2 * W), out.shape

    ref = jax.block_until_ready(_reference(x, params))
    max_err = float(jnp.max(jnp.abs(out - ref)))
    assert jnp.allclose(out, ref, atol=1e-4, rtol=1e-4), max_err

    print("KERNEL_OK")
</pallas_src>

<mosaic_0001>
module attributes {stable_mosaic.version = 11 : i64} {
  func.func @_decoder_block_kernel(%arg0: i32, %arg1: memref<1x16x64xf32, #tpu.memory_space<vmem>>, %arg2: memref<192x128xf32, #tpu.memory_space<vmem>>, %arg3: memref<1x128xf32, #tpu.memory_space<vmem>>, %arg4: memref<128x256xf32, #tpu.memory_space<vmem>>, %arg5: memref<128x128xf32, #tpu.memory_space<vmem>>, %arg6: memref<128x128xf32, #tpu.memory_space<vmem>>, %arg7: memref<1x128xf32, #tpu.memory_space<vmem>>, %arg8: memref<1x2x16x128xf32, #tpu.memory_space<vmem>>, %arg9: memref<1x16x192xf32, #tpu.memory_space<vmem>>, %arg10: memref<1x16x256xf32, #tpu.memory_space<vmem>>) attributes {dimension_semantics = [#tpu.dimension_semantics<parallel>], iteration_bounds = array<i64: 2>, scalar_prefetch = 0 : i64, scratch_operands = 2 : i64, tpu.core_type = #tpu.core_type<tc>, window_params = [{transform_indices = @transform_0, window_bounds = array<i64: 1, 16, 64>}, {pipeline_mode = #tpu.pipeline_mode<synchronous>, transform_indices = @transform_1, window_bounds = array<i64: 192, 128>}, {pipeline_mode = #tpu.pipeline_mode<synchronous>, transform_indices = @transform_2, window_bounds = array<i64: 1, 128>}, {pipeline_mode = #tpu.pipeline_mode<synchronous>, transform_indices = @transform_3, window_bounds = array<i64: 128, 256>}, {pipeline_mode = #tpu.pipeline_mode<synchronous>, transform_indices = @transform_4, window_bounds = array<i64: 128, 128>}, {pipeline_mode = #tpu.pipeline_mode<synchronous>, transform_indices = @transform_5, window_bounds = array<i64: 128, 128>}, {pipeline_mode = #tpu.pipeline_mode<synchronous>, transform_indices = @transform_6, window_bounds = array<i64: 1, 128>}, {transform_indices = @transform_7, window_bounds = array<i64: 1, 2, 16, 128>}]} {
    %c0 = arith.constant 0 : index
    %c0_0 = arith.constant 0 : index
    %c0_1 = arith.constant 0 : index
    %0 = vector.load %arg1[%c0, %c0_0, %c0_1] : memref<1x16x64xf32, #tpu.memory_space<vmem>>, vector<1x16x64xf32>
    %c0_2 = arith.constant 0 : index
    %c0_3 = arith.constant 0 : index
    %c64 = arith.constant 64 : index
    %1 = vector.load %arg9[%c0_2, %c0_3, %c64] : memref<1x16x192xf32, #tpu.memory_space<vmem>>, vector<1x16x64xf32>
    tpu.vector_store %arg9[%c0_2, %c0_3, %c64], %0 {strides = array<i32>} : memref<1x16x192xf32, #tpu.memory_space<vmem>>, vector<1x16x64xf32>,
    %c0_4 = arith.constant 0 : index
    %c0_5 = arith.constant 0 : index
    %c0_6 = arith.constant 0 : index
    %2 = vector.load %arg1[%c0_4, %c0_5, %c0_6] : memref<1x16x64xf32, #tpu.memory_space<vmem>>, vector<1x15x64xf32>
    %c0_7 = arith.constant 0 : index
    %c1 = arith.constant 1 : index
    %c0_8 = arith.constant 0 : index
    %3 = vector.load %arg9[%c0_7, %c1, %c0_8] : memref<1x16x192xf32, #tpu.memory_space<vmem>>, vector<1x15x64xf32>
    tpu.vector_store %arg9[%c0_7, %c1, %c0_8], %2 {strides = array<i32>} : memref<1x16x192xf32, #tpu.memory_space<vmem>>, vector<1x15x64xf32>,
    %cst = arith.constant 0.000000e+00 : f32
    %4 = vector.broadcast %cst : f32 to vector<1x1x64xf32>
    %c0_9 = arith.constant 0 : index
    %c0_10 = arith.constant 0 : index
    %c0_11 = arith.constant 0 : index
    %5 = vector.load %arg9[%c0_9, %c0_10, %c0_11] : memref<1x16x192xf32, #tpu.memory_space<vmem>>, vector<1x1x64xf32>
    tpu.vector_store %arg9[%c0_9, %c0_10, %c0_11], %4 {strides = array<i32>} : memref<1x16x192xf32, #tpu.memory_space<vmem>>, vector<1x1x64xf32>,
    %c0_12 = arith.constant 0 : index
    %c1_13 = arith.constant 1 : index
    %c0_14 = arith.constant 0 : index
    %6 = vector.load %arg1[%c0_12, %c1_13, %c0_14] : memref<1x16x64xf32, #tpu.memory_space<vmem>>, vector<1x15x64xf32>
    %c0_15 = arith.constant 0 : index
    %c0_16 = arith.constant 0 : index
    %c128 = arith.constant 128 : index
    %7 = vector.load %arg9[%c0_15, %c0_16, %c128] : memref<1x16x192xf32, #tpu.memory_space<vmem>>, vector<1x15x64xf32>
    tpu.vector_store %arg9[%c0_15, %c0_16, %c128], %6 {strides = array<i32>} : memref<1x16x192xf32, #tpu.memory_space<vmem>>, vector<1x15x64xf32>,
    %cst_17 = arith.constant 0.000000e+00 : f32
    %8 = vector.broadcast %cst_17 : f32 to vector<1x1x64xf32>
    %c0_18 = arith.constant 0 : index
    %c15 = arith.constant 15 : index
    %c128_19 = arith.constant 128 : index
    %9 = vector.load %arg9[%c0_18, %c15, %c128_19] : memref<1x16x192xf32, #tpu.memory_space<vmem>>, vector<1x1x64xf32>
    tpu.vector_store %arg9[%c0_18, %c15, %c128_19], %8 {strides = array<i32>} : memref<1x16x192xf32, #tpu.memory_space<vmem>>, vector<1x1x64xf32>,
    %c0_20 = arith.constant 0 : index
    %c0_21 = arith.constant 0 : index
    %c0_22 = arith.constant 0 : index
    %10 = vector.load %arg9[%c0_20, %c0_21, %c0_22] : memref<1x16x192xf32, #tpu.memory_space<vmem>>, vector<1x16x192xf32>
    %11 = vector.shape_cast %10 : vector<1x16x192xf32> to vector<16x192xf32>
    %c0_23 = arith.constant 0 : index
    %c0_24 = arith.constant 0 : index
    %12 = vector.load %arg2[%c0_23, %c0_24] : memref<192x128xf32, #tpu.memory_space<vmem>>, vector<192x128xf32>
    %cst_25 = arith.constant dense<0.000000e+00> : vector<16x128xf32>
    %13 = tpu.matmul %11, %12, %cst_25 {dimension_numbers = #tpu.dot_dimension_numbers<[1], [0], [0], [1], [0, 0, 1, 1], [], []>} : vector<16x192xf32>, vector<192x128xf32>, vector<16x128xf32> -> vector<16x128xf32>
    %c0_26 = arith.constant 0 : index
    %c0_27 = arith.constant 0 : index
    %14 = vector.load %arg3[%c0_26, %c0_27] : memref<1x128xf32, #tpu.memory_space<vmem>>, vector<1x128xf32>
    %15 = vector.broadcast %14 : vector<1x128xf32> to vector<16x128xf32>
    %16 = arith.addf %13, %15 : vector<16x128xf32>
    %cst_28 = arith.constant 0.000000e+00 : f32
    %17 = vector.broadcast %cst_28 : f32 to vector<16x128xf32>
    %18 = arith.maximumf %16, %17 : vector<16x128xf32>
    %19 = vector.shape_cast %18 : vector<16x128xf32> to vector<1x16x128xf32>
    %20 = vector.extract_strided_slice %19 {offsets = [0, 0, 0], sizes = [1, 15, 128], strides = [1, 1, 1]} : vector<1x16x128xf32> to vector<1x15x128xf32>
    %c0_29 = arith.constant 0 : index
    %c1_30 = arith.constant 1 : index
    %c0_31 = arith.constant 0 : index
    %21 = vector.load %arg10[%c0_29, %c1_30, %c0_31] : memref<1x16x256xf32, #tpu.memory_space<vmem>>, vector<1x15x128xf32>
    tpu.vector_store %arg10[%c0_29, %c1_30, %c0_31], %20 {strides = array<i32>} : memref<1x16x256xf32, #tpu.memory_space<vmem>>, vector<1x15x128xf32>,
    %cst_32 = arith.constant 0.000000e+00 : f32
    %22 = vector.broadcast %cst_32 : f32 to vector<1x1x128xf32>
    %c0_33 = arith.constant 0 : index
    %c0_34 = arith.constant 0 : index
    %c0_35 = arith.constant 0 : index
    %23 = vector.load %arg10[%c0_33, %c0_34, %c0_35] : memref<1x16x256xf32, #tpu.memory_space<vmem>>, vector<1x1x128xf32>
    tpu.vector_store %arg10[%c0_33, %c0_34, %c0_35], %22 {strides = array<i32>} : memref<1x16x256xf32, #tpu.memory_space<vmem>>, vector<1x1x128xf32>,
    %24 = vector.extract_strided_slice %19 {offsets = [0, 1, 0], sizes = [1, 15, 128], strides = [1, 1, 1]} : vector<1x16x128xf32> to vector<1x15x128xf32>
    %c0_36 = arith.constant 0 : index
    %c0_37 = arith.constant 0 : index
    %c128_38 = arith.constant 128 : index
    %25 = vector.load %arg10[%c0_36, %c0_37, %c128_38] : memref<1x16x256xf32, #tpu.memory_space<vmem>>, vector<1x15x128xf32>
    tpu.vector_store %arg10[%c0_36, %c0_37, %c128_38], %24 {strides = array<i32>} : memref<1x16x256xf32, #tpu.memory_space<vmem>>, vector<1x15x128xf32>,
    %cst_39 = arith.constant 0.000000e+00 : f32
    %26 = vector.broadcast %cst_39 : f32 to vector<1x1x128xf32>
    %c0_40 = arith.constant 0 : index
    %c15_41 = arith.constant 15 : index
    %c128_42 = arith.constant 128 : index
    %27 = vector.load %arg10[%c0_40, %c15_41, %c128_42] : memref<1x16x256xf32, #tpu.memory_space<vmem>>, vector<1x1x128xf32>
    tpu.vector_store %arg10[%c0_40, %c15_41, %c128_42], %26 {strides = array<i32>} : memref<1x16x256xf32, #tpu.memory_space<vmem>>, vector<1x1x128xf32>,
    %c0_43 = arith.constant 0 : index
    %c0_44 = arith.constant 0 : index
    %c0_45 = arith.constant 0 : index
    %28 = vector.load %arg10[%c0_43, %c0_44, %c0_45] : memref<1x16x256xf32, #tpu.memory_space<vmem>>, vector<1x16x256xf32>
    %29 = vector.shape_cast %28 : vector<1x16x256xf32> to vector<16x256xf32>
    %30 = vector.extract_strided_slice %29 {offsets = [0, 0], sizes = [16, 128], strides = [1, 1]} : vector<16x256xf32> to vector<16x128xf32>
    %31 = vector.extract_strided_slice %29 {offsets = [0, 128], sizes = [16, 128], strides = [1, 1]} : vector<16x256xf32> to vector<16x128xf32>
    %c0_46 = arith.constant 0 : index
    %c0_47 = arith.constant 0 : index
    %32 = vector.load %arg4[%c0_46, %c0_47] : memref<128x256xf32, #tpu.memory_space<vmem>>, vector<128x256xf32>
    %cst_48 = arith.constant dense<0.000000e+00> : vector<16x256xf32>
    %33 = tpu.matmul %18, %32, %cst_48 {dimension_numbers = #tpu.dot_dimension_numbers<[1], [0], [0], [1], [0, 0, 1, 1], [], []>} : vector<16x128xf32>, vector<128x256xf32>, vector<16x256xf32> -> vector<16x256xf32>
    %34 = vector.extract_strided_slice %33 {offsets = [0, 0], sizes = [16, 128], strides = [1, 1]} : vector<16x256xf32> to vector<16x128xf32>
    %c0_49 = arith.constant 0 : index
    %c0_50 = arith.constant 0 : index
    %35 = vector.load %arg5[%c0_49, %c0_50] : memref<128x128xf32, #tpu.memory_space<vmem>>, vector<128x128xf32>
    %cst_51 = arith.constant dense<0.000000e+00> : vector<16x128xf32>
    %36 = tpu.matmul %30, %35, %cst_51 {dimension_numbers = #tpu.dot_dimension_numbers<[1], [0], [0], [1], [0, 0, 1, 1], [], []>} : vector<16x128xf32>, vector<128x128xf32>, vector<16x128xf32> -> vector<16x128xf32>
    %37 = arith.addf %34, %36 : vector<16x128xf32>
    %38 = vector.extract_strided_slice %33 {offsets = [0, 128], sizes = [16, 128], strides = [1, 1]} : vector<16x256xf32> to vector<16x128xf32>
    %c0_52 = arith.constant 0 : index
    %c0_53 = arith.constant 0 : index
    %39 = vector.load %arg6[%c0_52, %c0_53] : memref<128x128xf32, #tpu.memory_space<vmem>>, vector<128x128xf32>
    %cst_54 = arith.constant dense<0.000000e+00> : vector<16x128xf32>
    %40 = tpu.matmul %31, %39, %cst_54 {dimension_numbers = #tpu.dot_dimension_numbers<[1], [0], [0], [1], [0, 0, 1, 1], [], []>} : vector<16x128xf32>, vector<128x128xf32>, vector<16x128xf32> -> vector<16x128xf32>
    %41 = arith.addf %38, %40 : vector<16x128xf32>
    %c0_55 = arith.constant 0 : index
    %c0_56 = arith.constant 0 : index
    %42 = vector.load %arg7[%c0_55, %c0_56] : memref<1x128xf32, #tpu.memory_space<vmem>>, vector<1x128xf32>
    %43 = vector.broadcast %42 : vector<1x128xf32> to vector<16x128xf32>
    %44 = arith.addf %37, %43 : vector<16x128xf32>
    %cst_57 = arith.constant 0.000000e+00 : f32
    %45 = vector.broadcast %cst_57 : f32 to vector<16x128xf32>
    %46 = arith.maximumf %44, %45 : vector<16x128xf32>
    %c0_58 = arith.constant 0 : index
    %c0_59 = arith.constant 0 : index
    %47 = vector.load %arg7[%c0_58, %c0_59] : memref<1x128xf32, #tpu.memory_space<vmem>>, vector<1x128xf32>
    %48 = vector.broadcast %47 : vector<1x128xf32> to vector<16x128xf32>
    %49 = arith.addf %41, %48 : vector<16x128xf32>
    %cst_60 = arith.constant 0.000000e+00 : f32
    %50 = vector.broadcast %cst_60 : f32 to vector<16x128xf32>
    %51 = arith.maximumf %49, %50 : vector<16x128xf32>
    %52 = vector.shape_cast %46 : vector<16x128xf32> to vector<1x1x16x128xf32>
    %c0_61 = arith.constant 0 : index
    %c0_62 = arith.constant 0 : index
    %c0_63 = arith.constant 0 : index
    %c0_64 = arith.constant 0 : index
    %53 = vector.load %arg8[%c0_61, %c0_62, %c0_63, %c0_64] : memref<1x2x16x128xf32, #tpu.memory_space<vmem>>, vector<1x1x16x128xf32>
    tpu.vector_store %arg8[%c0_61, %c0_62, %c0_63, %c0_64], %52 {strides = array<i32>} : memref<1x2x16x128xf32, #tpu.memory_space<vmem>>, vector<1x1x16x128xf32>,
    %54 = vector.shape_cast %51 : vector<16x128xf32> to vector<1x1x16x128xf32>
    %c0_65 = arith.constant 0 : index
    %c1_66 = arith.constant 1 : index
    %c0_67 = arith.constant 0 : index
    %c0_68 = arith.constant 0 : index
    %55 = vector.load %arg8[%c0_65, %c1_66, %c0_67, %c0_68] : memref<1x2x16x128xf32, #tpu.memory_space<vmem>>, vector<1x1x16x128xf32>
    tpu.vector_store %arg8[%c0_65, %c1_66, %c0_67, %c0_68], %54 {strides = array<i32>} : memref<1x2x16x128xf32, #tpu.memory_space<vmem>>, vector<1x1x16x128xf32>,
    return
  }
  func.func @transform_0(%arg0: i32) -> (i32, i32, i32) {
    %c0_i32 = arith.constant 0 : i32
    %c0_i32_0 = arith.constant 0 : i32
    %c0_i32_1 = arith.constant 0 : i32
    return %arg0, %c0_i32, %c0_i32_0 : i32, i32, i32
  }
  func.func @transform_1(%arg0: i32) -> (i32, i32) {
    %c0_i32 = arith.constant 0 : i32
    %c0_i32_0 = arith.constant 0 : i32
    %c0_i32_1 = arith.constant 0 : i32
    return %c0_i32, %c0_i32_0 : i32, i32
  }
  func.func @transform_2(%arg0: i32) -> (i32, i32) {
    %c0_i32 = arith.constant 0 : i32
    %c0_i32_0 = arith.constant 0 : i32
    %c0_i32_1 = arith.constant 0 : i32
    return %c0_i32, %c0_i32_0 : i32, i32
  }
  func.func @transform_3(%arg0: i32) -> (i32, i32) {
    %c0_i32 = arith.constant 0 : i32
    %c0_i32_0 = arith.constant 0 : i32
    %c0_i32_1 = arith.constant 0 : i32
    return %c0_i32, %c0_i32_0 : i32, i32
  }
  func.func @transform_4(%arg0: i32) -> (i32, i32) {
    %c0_i32 = arith.constant 0 : i32
    %c0_i32_0 = arith.constant 0 : i32
    %c0_i32_1 = arith.constant 0 : i32
    return %c0_i32, %c0_i32_0 : i32, i32
  }
  func.func @transform_5(%arg0: i32) -> (i32, i32) {
    %c0_i32 = arith.constant 0 : i32
    %c0_i32_0 = arith.constant 0 : i32
    %c0_i32_1 = arith.constant 0 : i32
    return %c0_i32, %c0_i32_0 : i32, i32
  }
  func.func @transform_6(%arg0: i32) -> (i32, i32) {
    %c0_i32 = arith.constant 0 : i32
    %c0_i32_0 = arith.constant 0 : i32
    %c0_i32_1 = arith.constant 0 : i32
    return %c0_i32, %c0_i32_0 : i32, i32
  }
  func.func @transform_7(%arg0: i32) -> (i32, i32, i32, i32) {
    %c0_i32 = arith.constant 0 : i32
    %c0_i32_0 = arith.constant 0 : i32
    %c0_i32_1 = arith.constant 0 : i32
    %c0_i32_2 = arith.constant 0 : i32
    return %arg0, %c0_i32, %c0_i32_0, %c0_i32_1 : i32, i32, i32, i32
  }
}

</mosaic_0001>

<llo_original>
// kernel: decoder_block_forward.1
$region0: #{decoder_block_forward.1}
  #allocation0 [shape = 'u32[]', space=smem, size = 0x4, offset = 0x4, fixed_abs, tag = 'smem constant byte address 0x4 - core index']
  #allocation1 [shape = 'u32[144,128]{1,0:T(1,128)}', space=vmem, size = 0x12000, scoped, tag = 'internal scratch']
  #allocation2 [shape = 'f32[1,16,192]{2,1,0:T(8,128)}', space=vmem, size = 0x4000, scoped, tag = 'scratch operand']
  #allocation3 [shape = 'f32[1,16,256]{2,1,0:T(8,128)}', space=vmem, size = 0x4000, scoped, tag = 'scratch operand']
  %s0 = inlined_call_operand.vmem [shape: f32[2,16,64], index: 0, kind: input, shape index: {}]
  %s1 = inlined_call_operand.hbm [shape: f32[192,128], index: 1, kind: input, shape index: {}]
  %s2 = inlined_call_operand.vmem [shape: f32[1,128], index: 2, kind: input, shape index: {}]
  %s3 = inlined_call_operand.vmem [shape: f32[128,256], index: 3, kind: input, shape index: {}]
  %s4 = inlined_call_operand.vmem [shape: f32[128,128], index: 4, kind: input, shape index: {}]
  %s5 = inlined_call_operand.hbm [shape: f32[128,128], index: 5, kind: input, shape index: {}]
  %s6 = inlined_call_operand.vmem [shape: f32[1,128], index: 6, kind: input, shape index: {}]
  %s7 = inlined_call_operand.vmem [shape: f32[2,2,16,128], index: 7, kind: output, shape index: {}]
  %s8 = sld [smem:[#allocation0]]
  $region69: #{decoder_block_forward.1} parent=0
    _
  %s10 = ssub.s32 1, %s8
  %s11 = scalar_select 0, %s10, %s8
  $region1: #{decoder_block_forward.1} parent=0
    #allocation4 [shape = 'u8[98304]{0}', space=vmem, size = 0x18000, scoped, tag = 'input window, operand 1, single buffered']
    #allocation5 [shape = 's32[2]{0}', space=sflag, size = 0x8, scoped, tag = 'scoped memory for decoder_block_forward.1']
    #allocation6 [shape = 'u8[65536]{0}', space=vmem, size = 0x10000, scoped, tag = 'input window, operand 5, single buffered']
    #allocation7 [shape = 's32[1]{0}', space=sflag, size = 0x4, scoped, tag = 'scoped memory for decoder_block_forward.1']
    %12 = vsyncpa [#allocation5], 0
    %13 = vsyncpa [#allocation7], 0
    loop: start=0, step=1, limit=4
    $region2: #{decoder_block_forward.1} parent=1 // loop_pre_header
      _
    $region3: #{decoder_block_forward.1} parent=1 // loop_header
      %s15 = sphi 0, %s19
      %p16 = scmp.ge.s32.totalorder %s15, 4
      %s25 = sphi 0, %s27
      %s28 = sphi 0, %s25
      %s29 = sphi 0, %s28
      %s45 = sphi 0, %s29
      %s49 = sphi 0, %s49
      %s51 = sphi 0, %s49
      %s52 = sphi 0, %s51
      %s66 = sphi 0, %s52
      %s70 = sphi 0, %s70
      %s72 = sphi 0, %s70
      %s73 = sphi 0, %s72
      %s87 = sphi 0, %s73
      %s91 = sphi 0, %s91
      %s93 = sphi 0, %s91
      %s94 = sphi 0, %s93
      %s108 = sphi 0, %s94
      %s112 = sphi 0, %s112
      %s114 = sphi 0, %s112
      %s115 = sphi 0, %s114
      %s129 = sphi 0, %s115
      %s133 = sphi 0, %s133
      %s135 = sphi 0, %s133
      %s136 = sphi 0, %s135
      %s150 = sphi 0, %s136
      %s154 = sphi 0, %s154
      %s156 = sphi 0, %s154
      %s157 = sphi 0, %s156
      %s171 = sphi 0, %s157
      %s177 = sphi 0, %s179
      %s180 = sphi 0, %s177
      %s181 = sphi 0, %s180
      %s197 = sphi 0, %s181
    $region4: #{decoder_block_forward.1} parent=1 // loop_header_branch
      %18 = sbr.rel (%p16) target = $region8
    $region5: #{decoder_block_forward.1} parent=1 // loop_body
      %s20 = ssub.s32 %s15, 1
      %s21 = ssub.s32 %s15, 2
      %s22 = sadd.s32 %s15, 1
      %s23 = ssub.s32 %s15, %s22
      %p24 = scmp.eq.s32.totalorder %s23, 0
      %s26 = sadd.s32 %s25, 1
      %s27 = scalar_select %p24, %s25, %s26
      %p30 = pneg %p24
      %p31 = scmp.eq.s32.totalorder %s15, 1
      %p32 = por %p30, %p31
      %p33 = scmp.ne.s32.totalorder %s25, %s28
      %p34 = scmp.eq.s32.totalorder %s15, 0
      %p35 = por %p33, %p34
      %p36 = scmp.ne.s32.totalorder %s25, %s28
      %p37 = scmp.eq.s32.totalorder %s20, 1
      %p38 = por %p36, %p37
      %p39 = scmp.ne.s32.totalorder %s28, %s29
      %p40 = scmp.eq.s32.totalorder %s20, 0
      %p41 = por %p39, %p40
      %p42 = scmp.ne.s32.totalorder %s28, %s29
      %p43 = scmp.eq.s32.totalorder %s21, 1
      %p44 = por %p42, %p43
      %p46 = scmp.ne.s32.totalorder %s29, %s45
      %p47 = scmp.eq.s32.totalorder %s21, 0
      %p48 = por %p46, %p47
      %s50 = sadd.s32 %s49, 1
      %p53 = scmp.eq.s32.totalorder %s15, 1
      %p54 = scmp.ne.s32.totalorder %s49, %s51
      %p55 = scmp.eq.s32.totalorder %s15, 0
      %p56 = por %p54, %p55
      %p57 = scmp.ne.s32.totalorder %s49, %s51
      %p58 = scmp.eq.s32.totalorder %s20, 1
      %p59 = por %p57, %p58
      %p60 = scmp.ne.s32.totalorder %s51, %s52
      %p61 = scmp.eq.s32.totalorder %s20, 0
      %p62 = por %p60, %p61
      %p63 = scmp.ne.s32.totalorder %s51, %s52
      %p64 = scmp.eq.s32.totalorder %s21, 1
      %p65 = por %p63, %p64
      %p67 = scmp.ne.s32.totalorder %s52, %s66
      %p68 = scmp.eq.s32.totalorder %s21, 0
      %p69 = por %p67, %p68
      %s71 = sadd.s32 %s70, 1
      %p74 = scmp.eq.s32.totalorder %s15, 1
      %p75 = scmp.ne.s32.totalorder %s70, %s72
      %p76 = scmp.eq.s32.totalorder %s15, 0
      %p77 = por %p75, %p76
      %p78 = scmp.ne.s32.totalorder %s70, %s72
      %p79 = scmp.eq.s32.totalorder %s20, 1
      %p80 = por %p78, %p79
      %p81 = scmp.ne.s32.totalorder %s72, %s73
      %p82 = scmp.eq.s32.totalorder %s20, 0
      %p83 = por %p81, %p82
      %p84 = scmp.ne.s32.totalorder %s72, %s73
      %p85 = scmp.eq.s32.totalorder %s21, 1
      %p86 = por %p84, %p85
      %p88 = scmp.ne.s32.totalorder %s73, %s87
      %p89 = scmp.eq.s32.totalorder %s21, 0
      %p90 = por %p88, %p89
      %s92 = sadd.s32 %s91, 1
      %p95 = scmp.eq.s32.totalorder %s15, 1
      %p96 = scmp.ne.s32.totalorder %s91, %s93
      %p97 = scmp.eq.s32.totalorder %s15, 0
      %p98 = por %p96, %p97
      %p99 = scmp.ne.s32.totalorder %s91, %s93
      %p100 = scmp.eq.s32.totalorder %s20, 1
      %p101 = por %p99, %p100
      %p102 = scmp.ne.s32.totalorder %s93, %s94
      %p103 = scmp.eq.s32.totalorder %s20, 0
      %p104 = por %p102, %p103
      %p105 = scmp.ne.s32.totalorder %s93, %s94
      %p106 = scmp.eq.s32.totalorder %s21, 1
      %p107 = por %p105, %p106
      %p109 = scmp.ne.s32.totalorder %s94, %s108
      %p110 = scmp.eq.s32.totalorder %s21, 0
      %p111 = por %p109, %p110
      %s113 = sadd.s32 %s112, 1
      %p116 = scmp.eq.s32.totalorder %s15, 1
      %p117 = scmp.ne.s32.totalorder %s112, %s114
      %p118 = scmp.eq.s32.totalorder %s15, 0
      %p119 = por %p117, %p118
      %p120 = scmp.ne.s32.totalorder %s112, %s114
      %p121 = scmp.eq.s32.totalorder %s20, 1
      %p122 = por %p120, %p121
      %p123 = scmp.ne.s32.totalorder %s114, %s115
      %p124 = scmp.eq.s32.totalorder %s20, 0
      %p125 = por %p123, %p124
      %p126 = scmp.ne.s32.totalorder %s114, %s115
      %p127 = scmp.eq.s32.totalorder %s21, 1
      %p128 = por %p126, %p127
      %p130 = scmp.ne.s32.totalorder %s115, %s129
      %p131 = scmp.eq.s32.totalorder %s21, 0
      %p132 = por %p130, %p131
      %s134 = sadd.s32 %s133, 1
      %p137 = scmp.eq.s32.totalorder %s15, 1
      %p138 = scmp.ne.s32.totalorder %s133, %s135
      %p139 = scmp.eq.s32.totalorder %s15, 0
      %p140 = por %p138, %p139
      %p141 = scmp.ne.s32.totalorder %s133, %s135
      %p142 = scmp.eq.s32.totalorder %s20, 1
      %p143 = por %p141, %p142
      %p144 = scmp.ne.s32.totalorder %s135, %s136
      %p145 = scmp.eq.s32.totalorder %s20, 0
      %p146 = por %p144, %p145
      %p147 = scmp.ne.s32.totalorder %s135, %s136
      %p148 = scmp.eq.s32.totalorder %s21, 1
      %p149 = por %p147, %p148
      %p151 = scmp.ne.s32.totalorder %s136, %s150
      %p152 = scmp.eq.s32.totalorder %s21, 0
      %p153 = por %p151, %p152
      %s155 = sadd.s32 %s154, 1
      %p158 = scmp.eq.s32.totalorder %s15, 1
      %p159 = scmp.ne.s32.totalorder %s154, %s156
      %p160 = scmp.eq.s32.totalorder %s15, 0
      %p161 = por %p159, %p160
      %p162 = scmp.ne.s32.totalorder %s154, %s156
      %p163 = scmp.eq.s32.totalorder %s20, 1
      %p164 = por %p162, %p163
      %p165 = scmp.ne.s32.totalorder %s156, %s157
      %p166 = scmp.eq.s32.totalorder %s20, 0
      %p167 = por %p165, %p166
      %p168 = scmp.ne.s32.totalorder %s156, %s157
      %p169 = scmp.eq.s32.totalorder %s21, 1
      %p170 = por %p168, %p169
      %p172 = scmp.ne.s32.totalorder %s157, %s171
      %p173 = scmp.eq.s32.totalorder %s21, 0
      %p174 = por %p172, %p173
      %s175 = ssub.s32 %s15, %s22
      %p176 = scmp.eq.s32.totalorder %s175, 0
      %s178 = sadd.s32 %s177, 1
      %s179 = scalar_select %p176, %s177, %s178
      %p182 = pneg %p176
      %p183 = scmp.eq.s32.totalorder %s15, 1
      %p184 = por %p182, %p183
      %p185 = scmp.ne.s32.totalorder %s177, %s180
      %p186 = scmp.eq.s32.totalorder %s15, 0
      %p187 = por %p185, %p186
      %p188 = scmp.ne.s32.totalorder %s177, %s180
      %p189 = scmp.eq.s32.totalorder %s20, 1
      %p190 = por %p188, %p189
      %p191 = scmp.ne.s32.totalorder %s180, %s181
      %p192 = scmp.eq.s32.totalorder %s20, 0
      %p193 = por %p191, %p192
      %p194 = scmp.ne.s32.totalorder %s180, %s181
      %p195 = scmp.eq.s32.totalorder %s21, 1
      %p196 = por %p194, %p195
      %p198 = scmp.ne.s32.totalorder %s181, %s197
      %p199 = scmp.eq.s32.totalorder %s21, 0
      %p200 = por %p198, %p199
      %p201 = scmp.le.s32.totalorder 1, %s15
      %p202 = scmp.lt.s32.totalorder %s15, 3
      %p203 = pnand %p201, %p202
      %p204 = pneg %p203
      // Predicated region
      $region9: #{decoder_block_forward.1} parent=5 // pred_check
        _
      $region10: #{decoder_block_forward.1} parent=5 // pred_check_branch
        %206 = sbr.rel (%p203) target = $region12
      $region11: #{decoder_block_forward.1} parent=5 // pred_region
        %s207 = ssub.s32 %s15, 1
        // Predicated region
        $region13: #{decoder_block_forward.1} parent=11 // pred_check
          %p208 = pneg %p62
        $region14: #{decoder_block_forward.1} parent=11 // pred_check_branch
          %210 = sbr.rel (%p208) target = $region16
        $region15: #{decoder_block_forward.1} parent=11 // pred_region
          %s212 = ssub.s32 3072, 3072
          %213 = vsyncadd [#allocation5], %s212
          %s214 = sshll.u32 [#allocation4], 4
          %s215 = int_to_ptr.vmem [resolvable:$true] %s214
          %220 = dma.hbm_to_vmem [thread:$0]  %s1, 3072, %s215, [#allocation5], 128, 128, 8
        $region16: #{decoder_block_forward.1} parent=11 // pred_fallthru
          _
        // Predicated region
        $region17: #{decoder_block_forward.1} parent=11 // pred_check
          %p221 = pneg %p83
        $region18: #{decoder_block_forward.1} parent=11 // pred_check_branch
          %223 = sbr.rel (%p221) target = $region20
        $region19: #{decoder_block_forward.1} parent=11 // pred_region
          _
        $region20: #{decoder_block_forward.1} parent=11 // pred_fallthru
          _
        // Predicated region
        $region21: #{decoder_block_forward.1} parent=11 // pred_check
          %p224 = pneg %p104
        $region22: #{decoder_block_forward.1} parent=11 // pred_check_branch
          %226 = sbr.rel (%p224) target = $region24
        $region23: #{decoder_block_forward.1} parent=11 // pred_region
          _
        $region24: #{decoder_block_forward.1} parent=11 // pred_fallthru
          _
        // Predicated region
        $region25: #{decoder_block_forward.1} parent=11 // pred_check
          %p227 = pneg %p125
        $region26: #{decoder_block_forward.1} parent=11 // pred_check_branch
          %229 = sbr.rel (%p227) target = $region28
        $region27: #{decoder_block_forward.1} parent=11 // pred_region
          _
        $region28: #{decoder_block_forward.1} parent=11 // pred_fallthru
          _
        // Predicated region
        $region29: #{decoder_block_forward.1} parent=11 // pred_check
          %p230 = pneg %p146
        $region30: #{decoder_block_forward.1} parent=11 // pred_check_branch
          %232 = sbr.rel (%p230) target = $region32
        $region31: #{decoder_block_forward.1} parent=11 // pred_region
          %s234 = ssub.s32 2048, 2048
          %235 = vsyncadd [#allocation7], %s234
          %s236 = sshll.u32 [#allocation6], 4
          %s237 = int_to_ptr.vmem [resolvable:$true] %s236
          %242 = dma.hbm_to_vmem [thread:$0]  %s5, 2048, %s237, [#allocation7], 128, 128, 8
        $region32: #{decoder_block_forward.1} parent=11 // pred_fallthru
          _
        // Predicated region
        $region33: #{decoder_block_forward.1} parent=11 // pred_check
          %p243 = pneg %p167
        $region34: #{decoder_block_forward.1} parent=11 // pred_check_branch
          %245 = sbr.rel (%p243) target = $region36
        $region35: #{decoder_block_forward.1} parent=11 // pred_region
          _
        $region36: #{decoder_block_forward.1} parent=11 // pred_fallthru
          _
      $region12: #{decoder_block_forward.1} parent=5 // pred_fallthru
        _
      %p246 = scmp.lt.s32.totalorder %s15, 2
      // Predicated region
      $region37: #{decoder_block_forward.1} parent=5 // pred_check
        %p247 = pneg %p246
      $region38: #{decoder_block_forward.1} parent=5 // pred_check_branch
        %249 = sbr.rel (%p247) target = $region40
      $region39: #{decoder_block_forward.1} parent=5 // pred_region
        // Predicated region
        $region41: #{decoder_block_forward.1} parent=39 // pred_check
          %p250 = pneg %p35
        $region42: #{decoder_block_forward.1} parent=39 // pred_check_branch
          %252 = sbr.rel (%p250) target = $region44
        $region43: #{decoder_block_forward.1} parent=39 // pred_region
          %p253 = scmp.lt.s32.totalorder %s15, 1
          %s254 = scalar_select %p253, %s15, 1
          %s255 = smul.addr %s254, 2
          %s256 = smul.addr %s255, 8
          %s257 = scalar_lea.vmem %s0, %s256
        $region44: #{decoder_block_forward.1} parent=39 // pred_fallthru
          _
      $region40: #{decoder_block_forward.1} parent=5 // pred_fallthru
        _
      %p258 = scmp.le.s32.totalorder 1, %s15
      %p259 = scmp.lt.s32.totalorder %s15, 3
      %p260 = pnand %p258, %p259
      %p261 = pneg %p260
      // Predicated region
      $region45: #{decoder_block_forward.1} parent=5 // pred_check
        _
      $region46: #{decoder_block_forward.1} parent=5 // pred_check_branch
        %263 = sbr.rel (%p260) target = $region48
      $region47: #{decoder_block_forward.1} parent=5 // pred_region
        %s264 = ssub.s32 %s15, 1
        // Predicated region
        $region49: #{decoder_block_forward.1} parent=47 // pred_check
          %p265 = pneg %p62
        $region50: #{decoder_block_forward.1} parent=47 // pred_check_branch
          %267 = sbr.rel (%p265) target = $region52
        $region51: #{decoder_block_forward.1} parent=47 // pred_region
          %268 = dma.done [#allocation5], 3072
        $region52: #{decoder_block_forward.1} parent=47 // pred_fallthru
          _
        // Predicated region
        $region53: #{decoder_block_forward.1} parent=47 // pred_check
          %p269 = pneg %p146
        $region54: #{decoder_block_forward.1} parent=47 // pred_check_branch
          %271 = sbr.rel (%p269) target = $region56
        $region55: #{decoder_block_forward.1} parent=47 // pred_region
          %272 = dma.done [#allocation7], 2048
        $region56: #{decoder_block_forward.1} parent=47 // pred_fallthru
          _
        %p273 = scmp.lt.s32.totalorder %s20, 1
        %s274 = scalar_select %p273, %s20, 1
        %s275 = smul.addr %s274, 2
        %s276 = smul.addr %s275, 8
        %s277 = scalar_lea.vmem %s0, %s276
        %p278 = pneg %p41
        %p279 = pneg %p38
        %p280 = pneg %p62
        %p281 = pneg %p59
        %p282 = pneg %p83
        %p283 = pneg %p80
        %p284 = pneg %p104
        %p285 = pneg %p101
        %p286 = pneg %p125
        %p287 = pneg %p122
        %p288 = pneg %p146
        %p289 = pneg %p143
        %p290 = pneg %p167
        %p291 = pneg %p164
        %p292 = pneg %p193
        %p293 = pneg %p190
        %p294 = scmp.lt.s32.totalorder %s20, 1
        %s295 = scalar_select %p294, %s20, 1
        %s296 = smul.addr %s295, 4
        %s297 = smul.addr %s296, 8
        %s298 = scalar_lea.vmem %s7, %s297
        %p299 = scmp.lt.s32.totalorder %s20, 1
        %s300 = scalar_select %p299, %s20, 1
        %s301 = smul.addr %s300, 2
        %s302 = smul.addr %s301, 8
        %s303 = scalar_lea.vmem %s0, %s302
        %p304 = scmp.lt.s32.totalorder %s20, 1
        %s305 = scalar_select %p304, %s20, 1
        %s306 = smul.addr %s305, 4
        %s307 = smul.addr %s306, 8
        %s308 = scalar_lea.vmem %s7, %s307
        %v309 = vld [vmem:[%s303] sm:$0xff]
        %v310 = vld [vmem:[%s303 + $0x8] sm:$0xff]
        %313 = vrot.lane.b32.xlu0 %v309, 64
        %v314 = vpop.permute.xlu0 %313
        %315 = vrot.lane.b32.xlu0 %v310, 64
        %v316 = vpop.permute.xlu0 %315
        %vm319 = vcmask 1048064
        %320 = vst.msk [vmem:[#allocation2] sm:$0xff] %vm319, %v314
        %321 = vst.msk [vmem:[#allocation2 + $0x10] sm:$0xff] %vm319, %v316
        %v322 = vld [vmem:[%s303] sm:$0xff]
        %v323 = vld [vmem:[%s303 + $0x8] sm:$0x7f]
        %vm326 = vcmask 1040384
        %v327 = vrot.slane %v322, 7
        %v328 = vrot.slane %v323, 7
        %v329 = vsel %vm326, %v327, %v328
        %vm332 = vcmask 523265
        %333 = vst.msk [vmem:[#allocation2] sm:$0xfe] %vm332, %v327
        %vm334 = vcmask 523264
        %335 = vst.msk [vmem:[#allocation2 + $0x10] sm:$0xff] %vm334, %v329
        %vm336 = vcmask 516096
        %337 = vst.msk [vmem:[#allocation2] sm:$0x1] %vm336, 0.0
        %v338 = vld [vmem:[%s303 + $0x1] sm:$0xff]
        %v339 = vld [vmem:[%s303 + $0x9] sm:$0x7f]
        %340 = vst.msk [vmem:[#allocation2 + $0x8] sm:$0xff] %vm334, %v338
        %vm341 = vcmask 522240
        %342 = vst.msk [vmem:[#allocation2 + $0x18] sm:$0x7f] %vm341, %v339
        %343 = vst.msk [vmem:[#allocation2 + $0x1f] sm:$0x1] %vm336, 0.0
        %v344 = vld [vmem:[#allocation2] sm:$0xff]
        %v345 = vld [vmem:[#allocation2 + $0x8] sm:$0xff]
        %v346 = vld [vmem:[#allocation2 + $0x10] sm:$0xff]
        %v347 = vld [vmem:[#allocation2 + $0x18] sm:$0xff]
        %v348 = vld [vmem:[#allocation4] sm:$0xff]
        %v349 = vld [vmem:[#allocation4 + $0x8] sm:$0xff]
        %v350 = vld [vmem:[#allocation4 + $0x10] sm:$0xff]
        %v351 = vld [vmem:[#allocation4 + $0x18] sm:$0xff]
        %v352 = vld [vmem:[#allocation4 + $0x20] sm:$0xff]
        %v353 = vld [vmem:[#allocation4 + $0x28] sm:$0xff]
        %v354 = vld [vmem:[#allocation4 + $0x30] sm:$0xff]
        %v355 = vld [vmem:[#allocation4 + $0x38] sm:$0xff]
        %v356 = vld [vmem:[#allocation4 + $0x40] sm:$0xff]
        %v357 = vld [vmem:[#allocation4 + $0x48] sm:$0xff]
        %v358 = vld [vmem:[#allocation4 + $0x50] sm:$0xff]
        %v359 = vld [vmem:[#allocation4 + $0x58] sm:$0xff]
        %v360 = vld [vmem:[#allocation4 + $0x60] sm:$0xff]
        %v361 = vld [vmem:[#allocation4 + $0x68] sm:$0xff]
        %v362 = vld [vmem:[#allocation4 + $0x70] sm:$0xff]
        %v363 = vld [vmem:[#allocation4 + $0x78] sm:$0xff]
        %v364 = vld [vmem:[#allocation4 + $0x80] sm:$0xff]
        %v365 = vld [vmem:[#allocation4 + $0x88] sm:$0xff]
        %v366 = vld [vmem:[#allocation4 + $0x90] sm:$0xff]
        %v367 = vld [vmem:[#allocation4 + $0x98] sm:$0xff]
        %v368 = vld [vmem:[#allocation4 + $0xa0] sm:$0xff]
        %v369 = vld [vmem:[#allocation4 + $0xa8] sm:$0xff]
        %v370 = vld [vmem:[#allocation4 + $0xb0] sm:$0xff]
        %v371 = vld [vmem:[#allocation4 + $0xb8] sm:$0xff]
        %v372 = vld [vmem:[%s2] sm:$0x1]
        %v374 = vlaneseq
        %v375 = vshrl.u32 %v374, 7
        %v376 = vsub.s32 0, %v375
        %v377 = vrot.slane %v372, %v376
        %v380 = vsel %vm334, %v345, 0
        %v383 = vsel %vm334, %v347, 0
        %385 = vmatprep.subr.mxu0 0.0
        %386 = vmatpush1.msra.mxu0 %v348
        %387 = vmatprep.subr.mxu0 0.0
        %388 = vmatpush1.msra.mxu0 %v349
        %389 = vmatprep.subr.mxu0 0.0
        %390 = vmatpush1.msra.mxu0 %v350
        %391 = vmatprep.subr.mxu0 0.0
        %392 = vmatpush1.msra.mxu0 %v351
        %393 = vmatprep.subr.mxu0 0.0
        %394 = vmatpush1.msra.mxu0 %v352
        %395 = vmatprep.subr.mxu0 0.0
        %396 = vmatpush1.msra.mxu0 %v353
        %397 = vmatprep.subr.mxu0 0.0
        %398 = vmatpush1.msra.mxu0 %v354
        %399 = vmatprep.subr.mxu0 0.0
        %400 = vmatpush1.msra.mxu0 %v355
        %401 = vmatprep.subr.mxu0 0.0
        %402 = vmatpush1.msra.mxu0 %v356
        %403 = vmatprep.subr.mxu0 0.0
        %404 = vmatpush1.msra.mxu0 %v357
        %405 = vmatprep.subr.mxu0 0.0
        %406 = vmatpush1.msra.mxu0 %v358
        %407 = vmatprep.subr.mxu0 0.0
        %408 = vmatpush1.msra.mxu0 %v359
        %409 = vmatprep.subr.mxu0 0.0
        %410 = vmatpush1.msra.mxu0 %v360
        %411 = vmatprep.subr.mxu0 0.0
        %412 = vmatpush1.msra.mxu0 %v361
        %413 = vmatprep.subr.mxu0 0.0
        %414 = vmatpush1.msra.mxu0 %v362
        %415 = vmatprep.subr.mxu0 0.0
        %416 = vmatpush1.msra.mxu0 %v363
        %417 = vmatprep.subr.mxu0 0.0
        %418 = vmatpush1.msra.mxu0 %v364
        %419 = vmatprep.subr.mxu0 0.0
        %420 = vmatpush1.msra.mxu0 %v365
        %421 = vmatprep.subr.mxu0 0.0
        %422 = vmatpush1.msra.mxu0 %v366
        %423 = vmatprep.subr.mxu0 0.0
        %424 = vmatpush1.msra.mxu0 %v367
        %425 = vmatprep.subr.mxu0 0.0
        %426 = vmatpush1.msra.mxu0 %v368
        %427 = vmatprep.subr.mxu0 0.0
        %428 = vmatpush1.msra.mxu0 %v369
        %429 = vmatprep.subr.mxu0 0.0
        %430 = vmatpush1.msra.mxu0 %v370
        %431 = vmatprep.subr.mxu0 0.0
        %432 = vmatpush1.msra.mxu0 %v371
        %433 = vmatprep.subr.mxu0 0.0
        %434 = vmatpush1.msra.mxu0 0.0
        %435 = vmatprep.subr.mxu0 0.0
        %436 = vmatpush1.msra.mxu0 0.0
        %437 = vmatprep.subr.mxu0 0.0
        %438 = vmatpush1.msra.mxu0 0.0
        %439 = vmatprep.subr.mxu0 0.0
        %440 = vmatpush1.msra.mxu0 0.0
        %441 = vmatprep.subr.mxu0 0.0
        %442 = vmatpush1.msra.mxu0 0.0
        %443 = vmatprep.subr.mxu0 0.0
        %444 = vmatpush1.msra.mxu0 0.0
        %445 = vmatprep.subr.mxu0 0.0
        %446 = vmatpush1.msra.mxu0 0.0
        %447 = vmatprep.subr.mxu0 0.0
        %448 = vmatpush1.msra.mxu0 0.0
        %449 = vmatprep.mubr.f32.mxu0 %v380
        %450 = vmatmul.mubr.f32.gmra.mrb[0].mxu0 %v344
        %v451 = vpop.f32.mrb[0].mxu0
        %v452 = vadd.f32 %v377, %v451
        %v453 = vpop.f32.mrb[0].mxu0
        %454 = vmatprep.mubr.f32.mxu0 %v383
        %455 = vmatmul.mubr.f32.gmra.mrb[0].mxu0 %v346
        %v456 = vpop.f32.mrb[0].mxu0
        %v457 = vadd.f32 %v377, %v456
        %v458 = vpop.f32.mrb[0].mxu0
        %459 = vdwg.mxu0
        %v460 = vmax.f32 %v452, 0.0
        %v461 = vmax.f32 %v457, 0.0
        %v464 = vrot.slane %v460, 7
        %v465 = vrot.slane %v461, 7
        %v466 = vsel %vm326, %v464, %v465
        %469 = vst [vmem:[#allocation3] sm:$0xfe] %v464
        %470 = vst [vmem:[#allocation3 + $0x10] sm:$0xff] %v466
        %471 = vst [vmem:[#allocation3] sm:$0x1] 0.0
        %vm472 = vcmask 1046528
        %v473 = vrot.slane %v460, 1
        %v474 = vrot.slane %v461, 1
        %v475 = vsel %vm472, %v473, %v474
        %478 = vst [vmem:[#allocation3 + $0x8] sm:$0xff] %v475
        %479 = vst [vmem:[#allocation3 + $0x18] sm:$0x7f] %v474
        %480 = vst [vmem:[#allocation3 + $0x1f] sm:$0x1] 0.0
        %v481 = vld [vmem:[#allocation3] sm:$0xff]
        %v482 = vld [vmem:[#allocation3 + $0x8] sm:$0xff]
        %v483 = vld [vmem:[#allocation3 + $0x10] sm:$0xff]
        %v484 = vld [vmem:[#allocation3 + $0x18] sm:$0xff]
        %v485 = vld [vmem:[%s3] sm:$0xff]
        %v486 = vld [vmem:[%s3 + $0x8] sm:$0xff]
        %v487 = vld [vmem:[%s3 + $0x10] sm:$0xff]
        %v488 = vld [vmem:[%s3 + $0x18] sm:$0xff]
        %v489 = vld [vmem:[%s3 + $0x20] sm:$0xff]
        %v490 = vld [vmem:[%s3 + $0x28] sm:$0xff]
        %v491 = vld [vmem:[%s3 + $0x30] sm:$0xff]
        %v492 = vld [vmem:[%s3 + $0x38] sm:$0xff]
        %v493 = vld [vmem:[%s3 + $0x40] sm:$0xff]
        %v494 = vld [vmem:[%s3 + $0x48] sm:$0xff]
        %v495 = vld [vmem:[%s3 + $0x50] sm:$0xff]
        %v496 = vld [vmem:[%s3 + $0x58] sm:$0xff]
        %v497 = vld [vmem:[%s3 + $0x60] sm:$0xff]
        %v498 = vld [vmem:[%s3 + $0x68] sm:$0xff]
        %v499 = vld [vmem:[%s3 + $0x70] sm:$0xff]
        %v500 = vld [vmem:[%s3 + $0x78] sm:$0xff]
        %v501 = vld [vmem:[%s3 + $0x80] sm:$0xff]
        %v502 = vld [vmem:[%s3 + $0x88] sm:$0xff]
        %v503 = vld [vmem:[%s3 + $0x90] sm:$0xff]
        %v504 = vld [vmem:[%s3 + $0x98] sm:$0xff]
        %v505 = vld [vmem:[%s3 + $0xa0] sm:$0xff]
        %v506 = vld [vmem:[%s3 + $0xa8] sm:$0xff]
        %v507 = vld [vmem:[%s3 + $0xb0] sm:$0xff]
        %v508 = vld [vmem:[%s3 + $0xb8] sm:$0xff]
        %v509 = vld [vmem:[%s3 + $0xc0] sm:$0xff]
        %v510 = vld [vmem:[%s3 + $0xc8] sm:$0xff]
        %v511 = vld [vmem:[%s3 + $0xd0] sm:$0xff]
        %v512 = vld [vmem:[%s3 + $0xd8] sm:$0xff]
        %v513 = vld [vmem:[%s3 + $0xe0] sm:$0xff]
        %v514 = vld [vmem:[%s3 + $0xe8] sm:$0xff]
        %v515 = vld [vmem:[%s3 + $0xf0] sm:$0xff]
        %v516 = vld [vmem:[%s3 + $0xf8] sm:$0xff]
        %517 = vmatprep.subr.mxu0 %v486
        %518 = vmatpush1.msra.mxu0 %v485
        %519 = vmatprep.subr.mxu0 %v488
        %520 = vmatpush1.msra.mxu0 %v487
        %521 = vmatprep.subr.mxu0 %v490
        %522 = vmatpush1.msra.mxu0 %v489
        %523 = vmatprep.subr.mxu0 %v492
        %524 = vmatpush1.msra.mxu0 %v491
        %525 = vmatprep.subr.mxu0 %v494
        %526 = vmatpush1.msra.mxu0 %v493
        %527 = vmatprep.subr.mxu0 %v496
        %528 = vmatpush1.msra.mxu0 %v495
        %529 = vmatprep.subr.mxu0 %v498
        %530 = vmatpush1.msra.mxu0 %v497
        %531 = vmatprep.subr.mxu0 %v500
        %532 = vmatpush1.msra.mxu0 %v499
        %533 = vmatprep.subr.mxu0 %v502
        %534 = vmatpush1.msra.mxu0 %v501
        %535 = vmatprep.subr.mxu0 %v504
        %536 = vmatpush1.msra.mxu0 %v503
        %537 = vmatprep.subr.mxu0 %v506
        %538 = vmatpush1.msra.mxu0 %v505
        %539 = vmatprep.subr.mxu0 %v508
        %540 = vmatpush1.msra.mxu0 %v507
        %541 = vmatprep.subr.mxu0 %v510
        %542 = vmatpush1.msra.mxu0 %v509
        %543 = vmatprep.subr.mxu0 %v512
        %544 = vmatpush1.msra.mxu0 %v511
        %545 = vmatprep.subr.mxu0 %v514
        %546 = vmatpush1.msra.mxu0 %v513
        %547 = vmatprep.subr.mxu0 %v516
        %548 = vmatpush1.msra.mxu0 %v515
        %549 = vmatprep.subr.mxu0 0.0
        %550 = vmatpush1.msra.mxu0 0.0
        %551 = vmatprep.subr.mxu0 0.0
        %552 = vmatpush1.msra.mxu0 0.0
        %553 = vmatprep.subr.mxu0 0.0
        %554 = vmatpush1.msra.mxu0 0.0
        %555 = vmatprep.subr.mxu0 0.0
        %556 = vmatpush1.msra.mxu0 0.0
        %557 = vmatprep.subr.mxu0 0.0
        %558 = vmatpush1.msra.mxu0 0.0
        %559 = vmatprep.subr.mxu0 0.0
        %560 = vmatpush1.msra.mxu0 0.0
        %561 = vmatprep.subr.mxu0 0.0
        %562 = vmatpush1.msra.mxu0 0.0
        %563 = vmatprep.subr.mxu0 0.0
        %564 = vmatpush1.msra.mxu0 0.0
        %565 = vmatprep.subr.mxu0 0.0
        %566 = vmatpush1.msra.mxu0 0.0
        %567 = vmatprep.subr.mxu0 0.0
        %568 = vmatpush1.msra.mxu0 0.0
        %569 = vmatprep.subr.mxu0 0.0
        %570 = vmatpush1.msra.mxu0 0.0
        %571 = vmatprep.subr.mxu0 0.0
        %572 = vmatpush1.msra.mxu0 0.0
        %573 = vmatprep.subr.mxu0 0.0
        %574 = vmatpush1.msra.mxu0 0.0
        %575 = vmatprep.subr.mxu0 0.0
        %576 = vmatpush1.msra.mxu0 0.0
        %577 = vmatprep.subr.mxu0 0.0
        %578 = vmatpush1.msra.mxu0 0.0
        %579 = vmatprep.subr.mxu0 0.0
        %580 = vmatpush1.msra.mxu0 0.0
        %581 = vmatprep.mubr.f32.mxu0 0.0
        %582 = vmatmul.mubr.f32.gmra.mrb[0].mxu0 %v460
        %v583 = vpop.f32.mrb[0].mxu0
        %v584 = vadd.f32 0.0, %v583
        %v585 = vpop.f32.mrb[0].mxu0
        %v586 = vadd.f32 0.0, %v585
        %587 = vmatprep.mubr.f32.mxu0 0.0
        %588 = vmatmul.mubr.f32.gmra.mrb[0].mxu0 %v461
        %v589 = vpop.f32.mrb[0].mxu0
        %v590 = vadd.f32 0.0, %v589
        %v591 = vpop.f32.mrb[0].mxu0
        %v592 = vadd.f32 0.0, %v591
        %593 = vdwg.mxu0
        %v594 = vld [vmem:[%s4] sm:$0xff]
        %v595 = vld [vmem:[%s4 + $0x8] sm:$0xff]
        %v596 = vld [vmem:[%s4 + $0x10] sm:$0xff]
        %v597 = vld [vmem:[%s4 + $0x18] sm:$0xff]
        %v598 = vld [vmem:[%s4 + $0x20] sm:$0xff]
        %v599 = vld [vmem:[%s4 + $0x28] sm:$0xff]
        %v600 = vld [vmem:[%s4 + $0x30] sm:$0xff]
        %v601 = vld [vmem:[%s4 + $0x38] sm:$0xff]
        %v602 = vld [vmem:[%s4 + $0x40] sm:$0xff]
        %v603 = vld [vmem:[%s4 + $0x48] sm:$0xff]
        %v604 = vld [vmem:[%s4 + $0x50] sm:$0xff]
        %v605 = vld [vmem:[%s4 + $0x58] sm:$0xff]
        %v606 = vld [vmem:[%s4 + $0x60] sm:$0xff]
        %v607 = vld [vmem:[%s4 + $0x68] sm:$0xff]
        %v608 = vld [vmem:[%s4 + $0x70] sm:$0xff]
        %v609 = vld [vmem:[%s4 + $0x78] sm:$0xff]
        %610 = vmatprep.subr.mxu0 0.0
        %611 = vmatpush1.msra.mxu0 %v594
        %612 = vmatprep.subr.mxu0 0.0
        %613 = vmatpush1.msra.mxu0 %v595
        %614 = vmatprep.subr.mxu0 0.0
        %615 = vmatpush1.msra.mxu0 %v596
        %616 = vmatprep.subr.mxu0 0.0
        %617 = vmatpush1.msra.mxu0 %v597
        %618 = vmatprep.subr.mxu0 0.0
        %619 = vmatpush1.msra.mxu0 %v598
        %620 = vmatprep.subr.mxu0 0.0
        %621 = vmatpush1.msra.mxu0 %v599
        %622 = vmatprep.subr.mxu0 0.0
        %623 = vmatpush1.msra.mxu0 %v600
        %624 = vmatprep.subr.mxu0 0.0
        %625 = vmatpush1.msra.mxu0 %v601
        %626 = vmatprep.subr.mxu0 0.0
        %627 = vmatpush1.msra.mxu0 %v602
        %628 = vmatprep.subr.mxu0 0.0
        %629 = vmatpush1.msra.mxu0 %v603
        %630 = vmatprep.subr.mxu0 0.0
        %631 = vmatpush1.msra.mxu0 %v604
        %632 = vmatprep.subr.mxu0 0.0
        %633 = vmatpush1.msra.mxu0 %v605
        %634 = vmatprep.subr.mxu0 0.0
        %635 = vmatpush1.msra.mxu0 %v606
        %636 = vmatprep.subr.mxu0 0.0
        %637 = vmatpush1.msra.mxu0 %v607
        %638 = vmatprep.subr.mxu0 0.0
        %639 = vmatpush1.msra.mxu0 %v608
        %640 = vmatprep.subr.mxu0 0.0
        %641 = vmatpush1.msra.mxu0 %v609
        %642 = vmatprep.subr.mxu0 0.0
        %643 = vmatpush1.msra.mxu0 0.0
        %644 = vmatprep.subr.mxu0 0.0
        %645 = vmatpush1.msra.mxu0 0.0
        %646 = vmatprep.subr.mxu0 0.0
        %647 = vmatpush1.msra.mxu0 0.0
        %648 = vmatprep.subr.mxu0 0.0
        %649 = vmatpush1.msra.mxu0 0.0
        %650 = vmatprep.subr.mxu0 0.0
        %651 = vmatpush1.msra.mxu0 0.0
        %652 = vmatprep.subr.mxu0 0.0
        %653 = vmatpush1.msra.mxu0 0.0
        %654 = vmatprep.subr.mxu0 0.0
        %655 = vmatpush1.msra.mxu0 0.0
        %656 = vmatprep.subr.mxu0 0.0
        %657 = vmatpush1.msra.mxu0 0.0
        %658 = vmatprep.subr.mxu0 0.0
        %659 = vmatpush1.msra.mxu0 0.0
        %660 = vmatprep.subr.mxu0 0.0
        %661 = vmatpush1.msra.mxu0 0.0
        %662 = vmatprep.subr.mxu0 0.0
        %663 = vmatpush1.msra.mxu0 0.0
        %664 = vmatprep.subr.mxu0 0.0
        %665 = vmatpush1.msra.mxu0 0.0
        %666 = vmatprep.subr.mxu0 0.0
        %667 = vmatpush1.msra.mxu0 0.0
        %668 = vmatprep.subr.mxu0 0.0
        %669 = vmatpush1.msra.mxu0 0.0
        %670 = vmatprep.subr.mxu0 0.0
        %671 = vmatpush1.msra.mxu0 0.0
        %672 = vmatprep.subr.mxu0 0.0
        %673 = vmatpush1.msra.mxu0 0.0
        %674 = vmatprep.mubr.f32.mxu0 0.0
        %675 = vmatmul.mubr.f32.gmra.mrb[0].mxu0 %v481
        %v676 = vpop.f32.mrb[0].mxu0
        %v677 = vadd.f32 0.0, %v676
        %v678 = vpop.f32.mrb[0].mxu0
        %679 = vmatprep.mubr.f32.mxu0 0.0
        %680 = vmatmul.mubr.f32.gmra.mrb[0].mxu0 %v483
        %v681 = vpop.f32.mrb[0].mxu0
        %v682 = vadd.f32 0.0, %v681
        %v683 = vpop.f32.mrb[0].mxu0
        %684 = vdwg.mxu0
        %v685 = vadd.f32 %v584, %v677
        %v686 = vadd.f32 %v590, %v682
        %v687 = vld [vmem:[#allocation6] sm:$0xff]
        %v688 = vld [vmem:[#allocation6 + $0x8] sm:$0xff]
        %v689 = vld [vmem:[#allocation6 + $0x10] sm:$0xff]
        %v690 = vld [vmem:[#allocation6 + $0x18] sm:$0xff]
        %v691 = vld [vmem:[#allocation6 + $0x20] sm:$0xff]
        %v692 = vld [vmem:[#allocation6 + $0x28] sm:$0xff]
        %v693 = vld [vmem:[#allocation6 + $0x30] sm:$0xff]
        %v694 = vld [vmem:[#allocation6 + $0x38] sm:$0xff]
        %v695 = vld [vmem:[#allocation6 + $0x40] sm:$0xff]
        %v696 = vld [vmem:[#allocation6 + $0x48] sm:$0xff]
        %v697 = vld [vmem:[#allocation6 + $0x50] sm:$0xff]
        %v698 = vld [vmem:[#allocation6 + $0x58] sm:$0xff]
        %v699 = vld [vmem:[#allocation6 + $0x60] sm:$0xff]
        %v700 = vld [vmem:[#allocation6 + $0x68] sm:$0xff]
        %v701 = vld [vmem:[#allocation6 + $0x70] sm:$0xff]
        %v702 = vld [vmem:[#allocation6 + $0x78] sm:$0xff]
        %703 = vmatprep.subr.mxu0 0.0
        %704 = vmatpush1.msra.mxu0 %v687
        %705 = vmatprep.subr.mxu0 0.0
        %706 = vmatpush1.msra.mxu0 %v688
        %707 = vmatprep.subr.mxu0 0.0
        %708 = vmatpush1.msra.mxu0 %v689
        %709 = vmatprep.subr.mxu0 0.0
        %710 = vmatpush1.msra.mxu0 %v690
        %711 = vmatprep.subr.mxu0 0.0
        %712 = vmatpush1.msra.mxu0 %v691
        %713 = vmatprep.subr.mxu0 0.0
        %714 = vmatpush1.msra.mxu0 %v692
        %715 = vmatprep.subr.mxu0 0.0
        %716 = vmatpush1.msra.mxu0 %v693
        %717 = vmatprep.subr.mxu0 0.0
        %718 = vmatpush1.msra.mxu0 %v694
        %719 = vmatprep.subr.mxu0 0.0
        %720 = vmatpush1.msra.mxu0 %v695
        %721 = vmatprep.subr.mxu0 0.0
        %722 = vmatpush1.msra.mxu0 %v696
        %723 = vmatprep.subr.mxu0 0.0
        %724 = vmatpush1.msra.mxu0 %v697
        %725 = vmatprep.subr.mxu0 0.0
        %726 = vmatpush1.msra.mxu0 %v698
        %727 = vmatprep.subr.mxu0 0.0
        %728 = vmatpush1.msra.mxu0 %v699
        %729 = vmatprep.subr.mxu0 0.0
        %730 = vmatpush1.msra.mxu0 %v700
        %731 = vmatprep.subr.mxu0 0.0
        %732 = vmatpush1.msra.mxu0 %v701
        %733 = vmatprep.subr.mxu0 0.0
        %734 = vmatpush1.msra.mxu0 %v702
        %735 = vmatprep.subr.mxu0 0.0
        %736 = vmatpush1.msra.mxu0 0.0
        %737 = vmatprep.subr.mxu0 0.0
        %738 = vmatpush1.msra.mxu0 0.0
        %739 = vmatprep.subr.mxu0 0.0
        %740 = vmatpush1.msra.mxu0 0.0
        %741 = vmatprep.subr.mxu0 0.0
        %742 = vmatpush1.msra.mxu0 0.0
        %743 = vmatprep.subr.mxu0 0.0
        %744 = vmatpush1.msra.mxu0 0.0
        %745 = vmatprep.subr.mxu0 0.0
        %746 = vmatpush1.msra.mxu0 0.0
        %747 = vmatprep.subr.mxu0 0.0
        %748 = vmatpush1.msra.mxu0 0.0
        %749 = vmatprep.subr.mxu0 0.0
        %750 = vmatpush1.msra.mxu0 0.0
        %751 = vmatprep.subr.mxu0 0.0
        %752 = vmatpush1.msra.mxu0 0.0
        %753 = vmatprep.subr.mxu0 0.0
        %754 = vmatpush1.msra.mxu0 0.0
        %755 = vmatprep.subr.mxu0 0.0
        %756 = vmatpush1.msra.mxu0 0.0
        %757 = vmatprep.subr.mxu0 0.0
        %758 = vmatpush1.msra.mxu0 0.0
        %759 = vmatprep.subr.mxu0 0.0
        %760 = vmatpush1.msra.mxu0 0.0
        %761 = vmatprep.subr.mxu0 0.0
        %762 = vmatpush1.msra.mxu0 0.0
        %763 = vmatprep.subr.mxu0 0.0
        %764 = vmatpush1.msra.mxu0 0.0
        %765 = vmatprep.subr.mxu0 0.0
        %766 = vmatpush1.msra.mxu0 0.0
        %767 = vmatprep.mubr.f32.mxu0 0.0
        %768 = vmatmul.mubr.f32.gmra.mrb[0].mxu0 %v482
        %v769 = vpop.f32.mrb[0].mxu0
        %v770 = vadd.f32 0.0, %v769
        %v771 = vpop.f32.mrb[0].mxu0
        %772 = vmatprep.mubr.f32.mxu0 0.0
        %773 = vmatmul.mubr.f32.gmra.mrb[0].mxu0 %v484
        %v774 = vpop.f32.mrb[0].mxu0
        %v775 = vadd.f32 0.0, %v774
        %v776 = vpop.f32.mrb[0].mxu0
        %777 = vdwg.mxu0
        %v778 = vadd.f32 %v586, %v770
        %v779 = vadd.f32 %v592, %v775
        %v780 = vld [vmem:[%s6] sm:$0x1]
        %v782 = vlaneseq
        %v783 = vshrl.u32 %v782, 7
        %v784 = vsub.s32 0, %v783
        %v785 = vrot.slane %v780, %v784
        %v787 = vadd.f32 %v685, %v785
        %v788 = vadd.f32 %v686, %v785
        %v789 = vmax.f32 %v787, 0.0
        %v790 = vmax.f32 %v788, 0.0
        %v791 = vadd.f32 %v778, %v785
        %v792 = vadd.f32 %v779, %v785
        %v793 = vmax.f32 %v791, 0.0
        %v794 = vmax.f32 %v792, 0.0
        %795 = vst [vmem:[%s308] sm:$0xff] %v789
        %796 = vst [vmem:[%s308 + $0x8] sm:$0xff] %v790
        %s797 = scalar_lea.vmem %s308, 16
        %798 = vst [vmem:[%s797] sm:$0xff] %v793
        %799 = vst [vmem:[%s797 + $0x8] sm:$0xff] %v794
        %p800 = scmp.lt.s32.totalorder %s20, 1
        %s801 = scalar_select %p800, %s20, 1
        %s802 = smul.addr %s801, 4
        %s803 = smul.addr %s802, 8
        %s804 = scalar_lea.vmem %s7, %s803
        // Predicated region
        $region57: #{decoder_block_forward.1} parent=47 // pred_check
          %p805 = pneg %p190
        $region58: #{decoder_block_forward.1} parent=47 // pred_check_branch
          %807 = sbr.rel (%p805) target = $region60
        $region59: #{decoder_block_forward.1} parent=47 // pred_region
          _
        $region60: #{decoder_block_forward.1} parent=47 // pred_fallthru
          _
      $region48: #{decoder_block_forward.1} parent=5 // pred_fallthru
        _
      %p808 = scmp.le.s32.totalorder 2, %s15
      // Predicated region
      $region61: #{decoder_block_forward.1} parent=5 // pred_check
        %p809 = pneg %p808
      $region62: #{decoder_block_forward.1} parent=5 // pred_check_branch
        %811 = sbr.rel (%p809) target = $region64
      $region63: #{decoder_block_forward.1} parent=5 // pred_region
        %s812 = ssub.s32 %s15, 2
        // Predicated region
        $region65: #{decoder_block_forward.1} parent=63 // pred_check
          %p813 = pneg %p196
        $region66: #{decoder_block_forward.1} parent=63 // pred_check_branch
          %815 = sbr.rel (%p813) target = $region68
        $region67: #{decoder_block_forward.1} parent=63 // pred_region
          %p816 = scmp.lt.s32.totalorder %s21, 1
          %s817 = scalar_select %p816, %s21, 1
          %s818 = smul.addr %s817, 4
          %s819 = smul.addr %s818, 8
          %s820 = scalar_lea.vmem %s7, %s819
        $region68: #{decoder_block_forward.1} parent=63 // pred_fallthru
          _
      $region64: #{decoder_block_forward.1} parent=5 // pred_fallthru
        _
    $region6: #{decoder_block_forward.1} parent=1 // loop_footer
      %s19 = sadd.s32 1, %s15
    $region7: #{decoder_block_forward.1} parent=1 // loop_footer_branch
      %14 = sbr.rel target = $region3
    $region8: #{decoder_block_forward.1} parent=1 // loop_exit
      _
    %821 = vsyncpa [#allocation5], 1
    %s822 = scalar_lea.sflag [#allocation5], 1
    %823 = vsyncpa %s822, 1
    %824 = vsyncpa [#allocation7], 1

</llo_original>
